<compile_context>
chip_gen: v7x
topology: tpu7x:2x2x1
jax: 0.10.0
libtpu: 0.0.40
codegen_flags: <defaults>
</compile_context>

<pallas_src>
import functools

import jax
import jax.numpy as jnp
from jax.experimental import pallas as pl
from jax.experimental.pallas import tpu as pltpu


_VMEM_LIMIT_BYTES = 32 * 1024 * 1024    # safe scoped-VMEM request on v5e/v6e/v7x
_TILE_VMEM_BUDGET = 24 * 1024 * 1024    # 3 inputs x 2 pipeline buffers live here


def _round_up(x, m):
    return ((x + m - 1) // m) * m


def _pad_rows(x, rows):
    b = x.shape[0]
    if rows == b:
        return x
    return jnp.pad(x, ((0, rows - b), (0, 0)))


def _row_losses(q, p, n, margin, distance):
    """Per-row triplet losses. q/p/n: (tile_b, D) f32 -> (tile_b, 1) f32."""
    if distance == "l2-norm":
        # F.pairwise_distance(x, y, p=2, eps=1e-6) == ||x - y + eps||_2
        eps = 1e-6
        dp = jnp.sqrt(jnp.sum((q - p + eps) ** 2, axis=-1, keepdims=True))
        dn = jnp.sqrt(jnp.sum((q - n + eps) ** 2, axis=-1, keepdims=True))
        return jnp.maximum(dp - dn + margin, 0.0)
    elif distance == "cosine":
        # F.cosine_similarity clamps each norm separately: x / max(||x||, eps).
        # max(sqrt(ss), eps) == sqrt(max(ss, eps^2)) -> use rsqrt (EUP slot).
        eps = 1e-8
        inv_q = jax.lax.rsqrt(jnp.maximum(jnp.sum(q * q, -1, keepdims=True), eps * eps))
        inv_p = jax.lax.rsqrt(jnp.maximum(jnp.sum(p * p, -1, keepdims=True), eps * eps))
        inv_n = jax.lax.rsqrt(jnp.maximum(jnp.sum(n * n, -1, keepdims=True), eps * eps))
        dp = jnp.sum(q * p, -1, keepdims=True) * (inv_q * inv_p)
        dn = jnp.sum(q * n, -1, keepdims=True) * (inv_q * inv_n)
        return jnp.maximum(dn - dp + margin, 0.0)
    elif distance == "dot":
        dp = jnp.sum(q * p, -1, keepdims=True)
        dn = jnp.sum(q * n, -1, keepdims=True)
        return jnp.maximum(dn - dp + margin, 0.0)
    else:
        raise TypeError(f"Unrecognized option for `distance`:{distance}")


def _triplet_none_kernel(q_ref, p_ref, n_ref, out_ref, *, margin, distance):
    q = q_ref[...].astype(jnp.float32)
    p = p_ref[...].astype(jnp.float32)
    n = n_ref[...].astype(jnp.float32)
    out_ref[...] = _row_losses(q, p, n, margin, distance)   # (tile_b, 1)


def _triplet_reduce_kernel(q_ref, p_ref, n_ref, out_ref, *,
                           margin, distance, tile_b, tiles_per_par, valid_rows):
    c = pl.program_id(0)        # "parallel" partial-sum axis (megacore on v7x)
    i = pl.program_id(1)        # "arbitrary" reduction axis

    @pl.when(i == 0)
    def _init():
        out_ref[...] = jnp.zeros_like(out_ref)

    q = q_ref[...].astype(jnp.float32)
    p = p_ref[...].astype(jnp.float32)
    n = n_ref[...].astype(jnp.float32)
    losses = _row_losses(q, p, n, margin, distance)          # (tile_b, 1) f32

    # Mask zero-padded batch rows so they contribute exactly 0 to the sum.
    row0 = (c * tiles_per_par + i) * tile_b
    rows = row0 + jax.lax.broadcasted_iota(jnp.int32, (tile_b, 1), 0)
    losses = jnp.where(rows < valid_rows, losses, 0.0)

    psum = jnp.sum(losses, axis=0, keepdims=True)            # (1, 1)
    out_ref[...] += psum.reshape(1, 1, 1)


def _pick_tile_b(B, D, itemsize, sublane):
    max_rows = _TILE_VMEM_BUDGET // (6 * D * itemsize)       # 3 inputs x 2 buffers
    max_rows = max(sublane, (max_rows // sublane) * sublane)
    tile_b = min(1024, _round_up(B, sublane), max_rows)
    return max(sublane, (tile_b // sublane) * sublane)


def triplet_loss(query, positive, negative, *,
                 margin=1.0, distance="l2-norm", reduction="mean", tile_b=None):
    assert query.shape == positive.shape == negative.shape
    assert query.ndim == 2
    B, D = query.shape
    in_dtype = query.dtype
    itemsize = jnp.dtype(in_dtype).itemsize
    sublane = max(8, 32 // itemsize)          # f32: 8, bf16: 16, int8/fp8: 32

    if tile_b is None:
        tile_b = _pick_tile_b(B, D, itemsize, sublane)
    tile_b = max(sublane, (int(tile_b) // sublane) * sublane)
    # TODO(synk): for extremely large D (6 * sublane * D * itemsize > VMEM budget)
    # the feature dim would also need tiling with a partial sum-of-squares
    # accumulator; not needed for SPECTER-sized embeddings.

    n_tiles = pl.cdiv(B, tile_b)
    margin = float(margin)

    def _cost(b_pad, out_bytes):
        return pl.CostEstimate(
            flops=int(9 * B * D),
            transcendentals=int(4 * B),
            bytes_accessed=int(3 * b_pad * D * itemsize + out_bytes),
        )

    if reduction == "none":
        b_pad = n_tiles * tile_b
        q, p, n = (_pad_rows(x, b_pad) for x in (query, positive, negative))
        kernel = functools.partial(_triplet_none_kernel,
                                   margin=margin, distance=distance)
        in_spec = pl.BlockSpec((tile_b, D), lambda i: (i, 0))
        out = pl.pallas_call(
            kernel,
            out_shape=jax.ShapeDtypeStruct((b_pad, 1), jnp.float32),
            grid=(n_tiles,),
            in_specs=[in_spec, in_spec, in_spec],
            out_specs=pl.BlockSpec((tile_b, 1), lambda i: (i, 0)),
            compiler_params=pltpu.CompilerParams(
                dimension_semantics=("parallel",),
                vmem_limit_bytes=_VMEM_LIMIT_BYTES),
            cost_estimate=_cost(b_pad, b_pad * 4),
        )(q, p, n)
        return out[:B, 0].astype(in_dtype)

    elif reduction in ("mean", "sum"):
        n_par = 2 if n_tiles > 1 else 1       # 2 partial sums -> 2 TCs on v7x
        tiles_per_par = pl.cdiv(n_tiles, n_par)
        b_pad = n_par * tiles_per_par * tile_b
        q, p, n = (_pad_rows(x, b_pad) for x in (query, positive, negative))
        kernel = functools.partial(_triplet_reduce_kernel,
                                   margin=margin, distance=distance,
                                   tile_b=tile_b, tiles_per_par=tiles_per_par,
                                   valid_rows=B)
        in_spec = pl.BlockSpec((tile_b, D),
                               lambda c, i: (c * tiles_per_par + i, 0))
        partials = pl.pallas_call(
            kernel,
            out_shape=jax.ShapeDtypeStruct((n_par, 1, 1), jnp.float32),
            grid=(n_par, tiles_per_par),
            in_specs=[in_spec, in_spec, in_spec],
            out_specs=pl.BlockSpec((1, 1, 1), lambda c, i: (c, 0, 0)),
            compiler_params=pltpu.CompilerParams(
                dimension_semantics=("parallel", "arbitrary"),
                vmem_limit_bytes=_VMEM_LIMIT_BYTES),
            cost_estimate=_cost(b_pad, n_par * 4),
        )(q, p, n)
        total = jnp.sum(partials)
        if reduction == "mean":
            total = total / jnp.float32(B)
        return total.astype(in_dtype)

    else:
        raise TypeError(f"Unrecognized option for `reduction`:{reduction}")


def _reference(query, positive, negative, margin=1.0,
               distance="l2-norm", reduction="mean"):
    q, p, n = (x.astype(jnp.float32) for x in (query, positive, negative))
    if distance == "l2-norm":
        dp = jnp.sqrt(jnp.sum((q - p + 1e-6) ** 2, axis=-1))
        dn = jnp.sqrt(jnp.sum((q - n + 1e-6) ** 2, axis=-1))
        losses = jax.nn.relu(dp - dn + margin)
    elif distance == "cosine":
        eps = 1e-8
        def cos(a, b):
            na = jnp.maximum(jnp.linalg.norm(a, axis=-1), eps)
            nb = jnp.maximum(jnp.linalg.norm(b, axis=-1), eps)
            return jnp.sum(a * b, -1) / (na * nb)
        losses = jax.nn.relu(-cos(q, p) + cos(q, n) + margin)
    else:  # dot
        losses = jax.nn.relu(-jnp.sum(q * p, -1) + jnp.sum(q * n, -1) + margin)
    if reduction == "mean":
        return losses.mean()
    if reduction == "sum":
        return losses.sum()
    return losses


if __name__ == "__main__":
    ok = True

    # Case 1: small shape consistent with the module (embedding triplets).
    key = jax.random.PRNGKey(0)
    kq, kp, kn = jax.random.split(key, 3)
    B, D = 8, 32
    query = jax.random.normal(kq, (B, D), dtype=jnp.float32)
    positive = jax.random.normal(kp, (B, D), dtype=jnp.float32)
    negative = jax.random.normal(kn, (B, D), dtype=jnp.float32)
    for dist in ("l2-norm", "cosine", "dot"):
        for red in ("mean", "sum", "none"):
            out = triplet_loss(query, positive, negative,
                               margin=1.0, distance=dist, reduction=red)
            out = jax.block_until_ready(out)
            ref = _reference(query, positive, negative, 1.0, dist, red)
            if not jnp.allclose(out, ref, rtol=1e-5, atol=1e-5):
                ok = False
                print(f"MISMATCH dist={dist} red={red}")

    # Case 2: multi-tile + batch padding + parallel partial-sum path
    # (tile_b forced small so the grid / masking / accumulator are exercised).
    B2, D2 = 20, 64
    k2 = jax.random.split(jax.random.PRNGKey(1), 3)
    q2 = jax.random.normal(k2[0], (B2, D2), dtype=jnp.float32)
    p2 = jax.random.normal(k2[1], (B2, D2), dtype=jnp.float32)
    n2 = jax.random.normal(k2[2], (B2, D2), dtype=jnp.float32)
    for dist in ("l2-norm", "cosine", "dot"):
        for red in ("mean", "sum", "none"):
            out = triplet_loss(q2, p2, n2, margin=0.5, distance=dist,
                               reduction=red, tile_b=8)
            out = jax.block_until_ready(out)
            ref = _reference(q2, p2, n2, 0.5, dist, red)
            if not jnp.allclose(out, ref, rtol=1e-5, atol=1e-5):
                ok = False
                print(f"MISMATCH (tiled) dist={dist} red={red}")

    # Case 3: bf16 inputs (halves HBM traffic for this bandwidth-bound op);
    # loose tolerance against the f32 reference.
    qb, pb, nb = (x.astype(jnp.bfloat16) for x in (q2, p2, n2))
    outb = jax.block_until_ready(
        triplet_loss(qb, pb, nb, margin=1.0, distance="cosine", reduction="mean"))
    refb = _reference(qb, pb, nb, 1.0, "cosine", "mean")
    if not jnp.allclose(outb.astype(jnp.float32), refb, rtol=5e-2, atol=5e-2):
        ok = False
        print("MISMATCH bf16")

    if ok:
        print("KERNEL_OK")
</pallas_src>

<mosaic_0001>
module attributes {stable_mosaic.version = 11 : i64} {
  func.func @_triplet_reduce_kernel(%arg0: i32, %arg1: i32, %arg2: memref<8x32xf32, #tpu.memory_space<vmem>>, %arg3: memref<8x32xf32, #tpu.memory_space<vmem>>, %arg4: memref<8x32xf32, #tpu.memory_space<vmem>>, %arg5: memref<1x1x1xf32, #tpu.memory_space<vmem>>) attributes {dimension_semantics = [#tpu.dimension_semantics<parallel>, #tpu.dimension_semantics<arbitrary>], iteration_bounds = array<i64: 1, 1>, scalar_prefetch = 0 : i64, scratch_operands = 0 : i64, tpu.core_type = #tpu.core_type<tc>, window_params = [{transform_indices = @transform_0, window_bounds = array<i64: 8, 32>}, {transform_indices = @transform_1, window_bounds = array<i64: 8, 32>}, {transform_indices = @transform_2, window_bounds = array<i64: 8, 32>}, {transform_indices = @transform_3, window_bounds = array<i64: 1, 1, 1>}]} {
    %c0_i32 = arith.constant 0 : i32
    %0 = arith.cmpi eq, %arg1, %c0_i32 : i32
    %1 = arith.extui %0 : i1 to i32
    %c0_i32_0 = arith.constant 0 : i32
    %2 = arith.cmpi ne, %1, %c0_i32_0 : i32
    scf.if %2 {
      %cst_20 = arith.constant 0.000000e+00 : f32
      %41 = vector.broadcast %cst_20 : f32 to vector<1x1x1xf32>
      %c0_21 = arith.constant 0 : index
      %c0_22 = arith.constant 0 : index
      %c0_23 = arith.constant 0 : index
      %42 = vector.load %arg5[%c0_21, %c0_22, %c0_23] : memref<1x1x1xf32, #tpu.memory_space<vmem>>, vector<1x1x1xf32>
      tpu.vector_store %arg5[%c0_21, %c0_22, %c0_23], %41 {strides = array<i32>} : memref<1x1x1xf32, #tpu.memory_space<vmem>>, vector<1x1x1xf32>,
    } else {
    }
    %c0 = arith.constant 0 : index
    %c0_1 = arith.constant 0 : index
    %3 = vector.load %arg2[%c0, %c0_1] : memref<8x32xf32, #tpu.memory_space<vmem>>, vector<8x32xf32>
    %c0_2 = arith.constant 0 : index
    %c0_3 = arith.constant 0 : index
    %4 = vector.load %arg3[%c0_2, %c0_3] : memref<8x32xf32, #tpu.memory_space<vmem>>, vector<8x32xf32>
    %c0_4 = arith.constant 0 : index
    %c0_5 = arith.constant 0 : index
    %5 = vector.load %arg4[%c0_4, %c0_5] : memref<8x32xf32, #tpu.memory_space<vmem>>, vector<8x32xf32>
    %6 = arith.subf %3, %4 : vector<8x32xf32>
    %cst = arith.constant 9.99999997E-7 : f32
    %7 = vector.broadcast %cst : f32 to vector<8x32xf32>
    %8 = arith.addf %6, %7 : vector<8x32xf32>
    %9 = arith.mulf %8, %8 : vector<8x32xf32>
    %cst_6 = arith.constant dense<0.000000e+00> : vector<8xf32>
    %10 = vector.multi_reduction <add>, %9, %cst_6 [1] : vector<8x32xf32> to vector<8xf32>
    %11 = vector.shape_cast %10 : vector<8xf32> to vector<8x1xf32>
    %12 = math.sqrt %11 : vector<8x1xf32>
    %13 = arith.subf %3, %5 : vector<8x32xf32>
    %cst_7 = arith.constant 9.99999997E-7 : f32
    %14 = vector.broadcast %cst_7 : f32 to vector<8x32xf32>
    %15 = arith.addf %13, %14 : vector<8x32xf32>
    %16 = arith.mulf %15, %15 : vector<8x32xf32>
    %cst_8 = arith.constant dense<0.000000e+00> : vector<8xf32>
    %17 = vector.multi_reduction <add>, %16, %cst_8 [1] : vector<8x32xf32> to vector<8xf32>
    %18 = vector.shape_cast %17 : vector<8xf32> to vector<8x1xf32>
    %19 = math.sqrt %18 : vector<8x1xf32>
    %20 = arith.subf %12, %19 : vector<8x1xf32>
    %cst_9 = arith.constant 1.000000e+00 : f32
    %21 = vector.broadcast %cst_9 : f32 to vector<8x1xf32>
    %22 = arith.addf %20, %21 : vector<8x1xf32>
    %cst_10 = arith.constant 0.000000e+00 : f32
    %23 = vector.broadcast %cst_10 : f32 to vector<8x1xf32>
    %24 = arith.maximumf %22, %23 : vector<8x1xf32>
    %c1_i32 = arith.constant 1 : i32
    %25 = arith.muli %arg0, %c1_i32 : i32
    %26 = arith.addi %25, %arg1 : i32
    %c8_i32 = arith.constant 8 : i32
    %27 = arith.muli %26, %c8_i32 : i32
    %28 = tpu.iota {dimensions = array<i32: 0>} : vector<8x1xi32>
    %29 = vector.broadcast %27 : i32 to vector<8x1xi32>
    %30 = arith.addi %29, %28 : vector<8x1xi32>
    %c8_i32_11 = arith.constant 8 : i32
    %31 = vector.broadcast %c8_i32_11 : i32 to vector<8x1xi32>
    %32 = arith.cmpi slt, %30, %31 : vector<8x1xi32>
    %cst_12 = arith.constant 0.000000e+00 : f32
    %33 = vector.broadcast %cst_12 : f32 to vector<8x1xf32>
    %34 = arith.select %32, %24, %33 : vector<8x1xi1>, vector<8x1xf32>
    %cst_13 = arith.constant dense<0.000000e+00> : vector<1xf32>
    %35 = vector.multi_reduction <add>, %34, %cst_13 [0] : vector<8x1xf32> to vector<1xf32>
    %36 = vector.shape_cast %35 : vector<1xf32> to vector<1x1xf32>
    %c0_14 = arith.constant 0 : index
    %c0_15 = arith.constant 0 : index
    %c0_16 = arith.constant 0 : index
    %37 = vector.load %arg5[%c0_14, %c0_15, %c0_16] : memref<1x1x1xf32, #tpu.memory_space<vmem>>, vector<1x1x1xf32>
    %38 = vector.shape_cast %36 : vector<1x1xf32> to vector<1x1x1xf32>
    %39 = arith.addf %37, %38 : vector<1x1x1xf32>
    %c0_17 = arith.constant 0 : index
    %c0_18 = arith.constant 0 : index
    %c0_19 = arith.constant 0 : index
    %40 = vector.load %arg5[%c0_17, %c0_18, %c0_19] : memref<1x1x1xf32, #tpu.memory_space<vmem>>, vector<1x1x1xf32>
    tpu.vector_store %arg5[%c0_17, %c0_18, %c0_19], %39 {strides = array<i32>} : memref<1x1x1xf32, #tpu.memory_space<vmem>>, vector<1x1x1xf32>,
    return
  }
  func.func @transform_0(%arg0: i32, %arg1: i32) -> (i32, i32) {
    %c1_i32 = arith.constant 1 : i32
    %0 = arith.muli %arg0, %c1_i32 : i32
    %1 = arith.addi %0, %arg1 : i32
    %c0_i32 = arith.constant 0 : i32
    %c0_i32_0 = arith.constant 0 : i32
    return %1, %c0_i32 : i32, i32
  }
  func.func @transform_1(%arg0: i32, %arg1: i32) -> (i32, i32) {
    %c1_i32 = arith.constant 1 : i32
    %0 = arith.muli %arg0, %c1_i32 : i32
    %1 = arith.addi %0, %arg1 : i32
    %c0_i32 = arith.constant 0 : i32
    %c0_i32_0 = arith.constant 0 : i32
    return %1, %c0_i32 : i32, i32
  }
  func.func @transform_2(%arg0: i32, %arg1: i32) -> (i32, i32) {
    %c1_i32 = arith.constant 1 : i32
    %0 = arith.muli %arg0, %c1_i32 : i32
    %1 = arith.addi %0, %arg1 : i32
    %c0_i32 = arith.constant 0 : i32
    %c0_i32_0 = arith.constant 0 : i32
    return %1, %c0_i32 : i32, i32
  }
  func.func @transform_3(%arg0: i32, %arg1: i32) -> (i32, i32, i32) {
    %c0_i32 = arith.constant 0 : i32
    %c0_i32_0 = arith.constant 0 : i32
    %c0_i32_1 = arith.constant 0 : i32
    return %arg0, %c0_i32, %c0_i32_0 : i32, i32, i32
  }
}

</mosaic_0001>

<llo_original>
// kernel: tpu_custom_call.1
$region0: #{tpu_custom_call.1}
  #allocation0 [shape = 'u32[]', space=smem, size = 0x4, offset = 0x4, fixed_abs, tag = 'smem constant byte address 0x4 - core index']
  #allocation1 [shape = 'u32[144,128]{1,0:T(1,128)}', space=vmem, size = 0x12000, scoped, tag = 'internal scratch']
  %s0 = inlined_call_operand.hbm [shape: f32[8,32], index: 0, kind: input, shape index: {}]
  %s1 = inlined_call_operand.hbm [shape: f32[8,32], index: 1, kind: input, shape index: {}]
  %s2 = inlined_call_operand.hbm [shape: f32[8,32], index: 2, kind: input, shape index: {}]
  %s3 = inlined_call_operand.hbm [shape: f32[1,1,1], index: 3, kind: output, shape index: {}]
  %s4 = sld [smem:[#allocation0]]
  $region38: #{tpu_custom_call.1} parent=0
    _
  %s6 = ssub.s32 1, %s4
  %s7 = scalar_select 0, %s6, %s4
  $region1: #{tpu_custom_call.1} parent=0
    #allocation2 [shape = 'u8[4096]{0}', space=vmem, size = 0x1000, scoped, tag = 'input window, operand 0, single buffered']
    #allocation3 [shape = 's32[1]{0}', space=sflag, size = 0x4, scoped, tag = 'scoped memory for tpu_custom_call.1']
    #allocation4 [shape = 's32[1]{0}', space=sflag, size = 0x4, scoped, tag = 'scoped memory for tpu_custom_call.1']
    #allocation5 [shape = 'u8[4096]{0}', space=vmem, size = 0x1000, scoped, tag = 'input window, operand 1, single buffered']
    #allocation6 [shape = 's32[1]{0}', space=sflag, size = 0x4, scoped, tag = 'scoped memory for tpu_custom_call.1']
    #allocation7 [shape = 'u8[4096]{0}', space=vmem, size = 0x1000, scoped, tag = 'input window, operand 2, single buffered']
    #allocation8 [shape = 'u8[512]{0}', space=vmem, size = 0x400, scoped, tag = 'output window, operand 0, single buffered']
    %8 = vsyncpa [#allocation3], 0
    %9 = vsyncpa [#allocation6], 0
    %10 = vsyncpa [#allocation4], 0
    // Predicated region
    $region2: #{tpu_custom_call.1} parent=1 // pred_check
      _
    $region3: #{tpu_custom_call.1} parent=1 // pred_check_branch
      %12 = sbr.rel (0) target = $region5
    $region4: #{tpu_custom_call.1} parent=1 // pred_region
      %s13 = sadd.s32 0, 0
      %s15 = ssub.s32 128, 128
      %16 = vsyncadd [#allocation3], %s15
      %s17 = smul.addr %s13, 128
      %s18 = scalar_lea.hbm %s0, %s17
      %s20 = sshll.u32 [#allocation2], 4
      %s21 = int_to_ptr.vmem [resolvable:$true] %s20
      %23 = dma.hbm_to_vmem [thread:$0]  %s18, 128, %s21, [#allocation3]
    $region5: #{tpu_custom_call.1} parent=1 // pred_fallthru
      _
    // Predicated region
    $region6: #{tpu_custom_call.1} parent=1 // pred_check
      _
    $region7: #{tpu_custom_call.1} parent=1 // pred_check_branch
      %25 = sbr.rel (0) target = $region9
    $region8: #{tpu_custom_call.1} parent=1 // pred_region
      %s26 = sadd.s32 0, 0
      %s28 = ssub.s32 128, 128
      %29 = vsyncadd [#allocation6], %s28
      %s30 = smul.addr %s26, 128
      %s31 = scalar_lea.hbm %s1, %s30
      %s33 = sshll.u32 [#allocation5], 4
      %s34 = int_to_ptr.vmem [resolvable:$true] %s33
      %36 = dma.hbm_to_vmem [thread:$0]  %s31, 128, %s34, [#allocation6]
    $region9: #{tpu_custom_call.1} parent=1 // pred_fallthru
      _
    // Predicated region
    $region10: #{tpu_custom_call.1} parent=1 // pred_check
      _
    $region11: #{tpu_custom_call.1} parent=1 // pred_check_branch
      %38 = sbr.rel (0) target = $region13
    $region12: #{tpu_custom_call.1} parent=1 // pred_region
      %s39 = sadd.s32 0, 0
      %s41 = ssub.s32 128, 128
      %42 = vsyncadd [#allocation6], %s41
      %s43 = smul.addr %s39, 128
      %s44 = scalar_lea.hbm %s2, %s43
      %s46 = sshll.u32 [#allocation7], 4
      %s47 = int_to_ptr.vmem [resolvable:$true] %s46
      %49 = dma.hbm_to_vmem [thread:$0]  %s44, 128, %s47, [#allocation6]
    $region13: #{tpu_custom_call.1} parent=1 // pred_fallthru
      _
    // Predicated region
    $region14: #{tpu_custom_call.1} parent=1 // pred_check
      _
    $region15: #{tpu_custom_call.1} parent=1 // pred_check_branch
      %51 = sbr.rel (0) target = $region17
    $region16: #{tpu_custom_call.1} parent=1 // pred_region
      %52 = dma.done [#allocation3], 128
    $region17: #{tpu_custom_call.1} parent=1 // pred_fallthru
      _
    // Predicated region
    $region18: #{tpu_custom_call.1} parent=1 // pred_check
      _
    $region19: #{tpu_custom_call.1} parent=1 // pred_check_branch
      %54 = sbr.rel (0) target = $region21
    $region20: #{tpu_custom_call.1} parent=1 // pred_region
      %55 = dma.done [#allocation6], 128
    $region21: #{tpu_custom_call.1} parent=1 // pred_fallthru
      _
    // Predicated region
    $region22: #{tpu_custom_call.1} parent=1 // pred_check
      _
    $region23: #{tpu_custom_call.1} parent=1 // pred_check_branch
      %57 = sbr.rel (0) target = $region25
    $region24: #{tpu_custom_call.1} parent=1 // pred_region
      %58 = dma.done [#allocation6], 128
    $region25: #{tpu_custom_call.1} parent=1 // pred_fallthru
      _
    %s59 = sadd.s32 0, 0
    %s60 = sadd.s32 0, 0
    %s61 = sadd.s32 0, 0
    %p62 = scmp.eq.s32.totalorder 0, 0
    // Predicated region
    $region26: #{tpu_custom_call.1} parent=1 // pred_check
      %p63 = pneg %p62
    $region27: #{tpu_custom_call.1} parent=1 // pred_check_branch
      %65 = sbr.rel (%p63) target = $region29
    $region28: #{tpu_custom_call.1} parent=1 // pred_region
      %vm66 = vcmask 0
      %67 = vst.msk [vmem:[#allocation8] sm:$0x1] %vm66, 0.0
    $region29: #{tpu_custom_call.1} parent=1 // pred_fallthru
      _
    %v68 = vld [vmem:[#allocation2] sm:$0xff]
    %v69 = vld [vmem:[#allocation5] sm:$0xff]
    %v70 = vld [vmem:[#allocation7] sm:$0xff]
    %v71 = vsub.f32 %v68, %v69
    %v72 = vadd.f32 %v71, 1e-06
    %v73 = vmul.f32 %v72, %v72
    %vm74 = vcmask 261120
    %v75 = vsel %vm74, %v73, 0.0
    %76 = vadd.xlane.f32.xlu0 %v75
    %v77 = vpop.xlane.xlu0 %76
    %v78 = vrsqrt.pop %v77
    %v79 = vmul.f32 %v77, %v78
    %vm80 = vcmp.eq.f32.partialorder %v77, inf
    %v81 = vsel %vm80, %v77, %v79
    %vm82 = vcmp.eq.f32.partialorder %v77, 0.0
    %v83 = vand.u32 %v77, 2147483648
    %v84 = vsel %vm82, %v83, %v81
    %v85 = vsub.f32 %v68, %v70
    %v86 = vadd.f32 %v85, 1e-06
    %v87 = vmul.f32 %v86, %v86
    %v88 = vsel %vm74, %v87, 0.0
    %89 = vadd.xlane.f32.xlu0 %v88
    %v90 = vpop.xlane.xlu0 %89
    %v91 = vrsqrt.pop %v90
    %v92 = vmul.f32 %v90, %v91
    %vm93 = vcmp.eq.f32.partialorder %v90, inf
    %v94 = vsel %vm93, %v90, %v92
    %vm95 = vcmp.eq.f32.partialorder %v90, 0.0
    %v96 = vand.u32 %v90, 2147483648
    %v97 = vsel %vm95, %v96, %v94
    %v98 = vsub.f32 %v84, %v97
    %v99 = vadd.f32 %v98, 1.0
    %v100 = vmax.f32 %v99, 0.0
    %s101 = sadd.s32 0, 0
    %s102 = smul.u32 %s101, 8
    %v103 = vlaneseq
    %v104 = vshrl.u32 %v103, 7
    %v105 = vstv %s102
    %v106 = vadd.s32 %v105, %v104
    %vm107 = vcmp.lt.s32.totalorder %v106, 8
    %v108 = vsel %vm107, %v100, 0.0
    %v109 = vrot.slane %v108, 4
    %v110 = vadd.f32 %v108, %v109
    %v111 = vrot.slane %v110, 2
    %v112 = vadd.f32 %v110, %v111
    %v113 = vrot.slane %v112, 1
    %v114 = vadd.f32 %v112, %v113
    %v115 = vld [vmem:[#allocation8] sm:$0x1]
    %v116 = vadd.f32 %v115, %v114
    %vm117 = vcmask 0
    %118 = vst.msk [vmem:[#allocation8] sm:$0x1] %vm117, %v116
    // Predicated region
    $region30: #{tpu_custom_call.1} parent=1 // pred_check
      _
    $region31: #{tpu_custom_call.1} parent=1 // pred_check_branch
      %120 = sbr.rel (0) target = $region33
    $region32: #{tpu_custom_call.1} parent=1 // pred_region
      %s122 = ssub.s32 16, 16
      %123 = vsyncadd [#allocation4], %s122
      %s125 = sshll.u32 [#allocation8], 4
      %s126 = int_to_ptr.vmem [resolvable:$true] %s125
      %128 = dma.vmem_to_hbm [thread:$0]  %s126, 16, %s3, [#allocation4]
    $region33: #{tpu_custom_call.1} parent=1 // pred_fallthru
      _
    // Predicated region
    $region34: #{tpu_custom_call.1} parent=1 // pred_check
      _
    $region35: #{tpu_custom_call.1} parent=1 // pred_check_branch
      %130 = sbr.rel (0) target = $region37
    $region36: #{tpu_custom_call.1} parent=1 // pred_region
      %131 = dma.done [#allocation4], 16
    $region37: #{tpu_custom_call.1} parent=1 // pred_fallthru
      _
    %132 = vsyncpa [#allocation3], 1
    %133 = vsyncpa [#allocation6], 1
    %134 = vsyncpa [#allocation4], 1

</llo_original>
